<compile_context>
chip_gen: v7x
topology: tpu7x:2x2x1
jax: 0.10.0
libtpu: 0.0.40
codegen_flags: <defaults>
</compile_context>

<pallas_src>
import jax
import jax.numpy as jnp
from jax import lax
from jax.experimental import pallas as pl
from jax.experimental.pallas import tpu as pltpu

PROJ_DIM = 128  # nn.Linear(feature_dim, 128) / nn.Linear(text_dim, 128)


# ---------------------------------------------------------------------------
# Kernels
# ---------------------------------------------------------------------------
def fused_prep_kernel(txt_ref, wt_ref, bt_ref, wi_ref, bi8_ref, mask_ref,
                      sw_ref, sbias_ref):
    """One-time prep: text_proj, then fold W_img / b_img / mask into the
    scores GEMM operands (fixes the half-width MXU utilization of two
    128-sized GEMMs on v6e/v7x)."""
    # text_proj = text @ W_txt + b_txt   (bf16 operands, f32 accumulate)
    tproj = jnp.dot(txt_ref[...], wt_ref[...],
                    preferred_element_type=jnp.float32) + bt_ref[...]
    # S_w = W_img @ text_proj.T  -> [k_pad, nt_pad], bf16 for the streamed GEMM
    sw = lax.dot_general(wi_ref[...], tproj.astype(jnp.bfloat16),
                         dimension_numbers=(((1,), (1,)), ((), ())),
                         preferred_element_type=jnp.float32)
    sw_ref[...] = sw.astype(jnp.bfloat16)
    # s_bias = b_img @ text_proj.T + key_mask -> [1, nt_pad]; kept strictly in
    # f32 because it carries the -1e30 padding mask (bf16 would overflow).
    sb = lax.dot_general(bi8_ref[...], tproj,
                         dimension_numbers=(((1,), (1,)), ((), ())),
                         preferred_element_type=jnp.float32)
    sbias_ref[...] = sb[0:1, :] + mask_ref[...]


def fused_attn_kernel(img_ref, sw_ref, sbias_ref, txt_ref, out_ref):
    """Streamed over image-row tiles: one scores GEMM + softmax + value GEMM."""
    scores = jnp.dot(img_ref[...], sw_ref[...],
                     preferred_element_type=jnp.float32) + sbias_ref[...]
    m = jnp.max(scores, axis=-1, keepdims=True)
    e = jnp.exp(scores - m)
    attn = e * pl.reciprocal(jnp.sum(e, axis=-1, keepdims=True), approx=True)
    out_ref[...] = jnp.dot(attn.astype(jnp.bfloat16), txt_ref[...],
                           preferred_element_type=jnp.float32)


def text_proj_kernel(txt_ref, wt_ref, bt_ref, tproj_ref):
    """General-path prep (large k_pad AND nt_pad): text projection only."""
    tp = jnp.dot(txt_ref[...], wt_ref[...],
                 preferred_element_type=jnp.float32) + bt_ref[...]
    tproj_ref[...] = tp.astype(jnp.bfloat16)


def general_attn_kernel(img_ref, wi_ref, bi_ref, tproj_ref, mask_ref, txt_ref,
                        out_ref):
    """Two-GEMM form kept when fusing would inflate FLOPs (k_pad>256 & nt_pad>128)."""
    iproj = jnp.dot(img_ref[...], wi_ref[...],
                    preferred_element_type=jnp.float32) + bi_ref[...]
    scores = lax.dot_general(iproj.astype(jnp.bfloat16), tproj_ref[...],
                             dimension_numbers=(((1,), (1,)), ((), ())),
                             preferred_element_type=jnp.float32) + mask_ref[...]
    m = jnp.max(scores, axis=-1, keepdims=True)
    e = jnp.exp(scores - m)
    attn = e * pl.reciprocal(jnp.sum(e, axis=-1, keepdims=True), approx=True)
    out_ref[...] = jnp.dot(attn.astype(jnp.bfloat16), txt_ref[...],
                           preferred_element_type=jnp.float32)


# ---------------------------------------------------------------------------
# Wrapper helpers
# ---------------------------------------------------------------------------
def _round_up(x, m):
    return ((x + m - 1) // m) * m


def _pad2(x, rows, cols, dtype):
    """Fused pad-and-cast (single pass; half the side HBM traffic of f32 pad)."""
    r, c = x.shape
    return jnp.pad(x.astype(dtype), ((0, rows - r), (0, cols - c)))


def _vmem_limit_bytes():
    """Per-generation scoped-VMEM limit: v5e/v6e have 128 MiB VMEM per
    TensorCore (-> 64 MiB limit), v7x only 64 MiB/TC (-> 32 MiB limit)."""
    try:
        cap = pltpu.get_tpu_info().vmem_capacity_bytes
    except Exception:
        cap = 64 * 1024 * 1024  # conservative v7x per-core floor
    return max(32 * 1024 * 1024, min(cap // 2, 64 * 1024 * 1024))


def _pick_tile_m(requested, n_img8, k_pad, td_pad, nt_pad, budget):
    """Largest row tile whose conservatively estimated VMEM footprint fits."""
    tile_m = min(_round_up(max(requested, 8), 8), n_img8)

    def footprint(tm):
        stream = tm * k_pad * 2 * 2        # bf16 image tile, double-buffered
        stream += tm * td_pad * 4 * 2      # f32 output tile, double-buffered
        work = tm * nt_pad * 4 * 3         # scores / exp / attn f32 working set
        resident = 2 * (k_pad * nt_pad * 2 + nt_pad * td_pad * 2
                        + nt_pad * PROJ_DIM * 2 + k_pad * PROJ_DIM * 2)
        return stream + work + resident

    while tile_m > 8 and footprint(tile_m) > budget:
        tile_m = _round_up(tile_m // 2, 8)
    return tile_m


# ---------------------------------------------------------------------------
# Wrapper
# ---------------------------------------------------------------------------
def cross_attention(image_features, text_embeddings, w_img, b_img, w_txt,
                    b_txt, *, tile_m=512):
    n_img, feature_dim = image_features.shape
    n_txt, text_dim = text_embeddings.shape
    bf16, f32 = jnp.bfloat16, jnp.float32

    # (8,128)-aligned padded sizes; lane dims -> 128, rows -> 8.
    k_pad = _round_up(feature_dim, 128)
    td_pad = _round_up(text_dim, 128)
    nt_pad = _round_up(n_txt, 128)
    n_img8 = _round_up(n_img, 8)

    vmem_limit = _vmem_limit_bytes()
    tile_m = _pick_tile_m(tile_m, n_img8, k_pad, td_pad, nt_pad,
                          budget=int(vmem_limit * 0.8))
    nm_pad = _round_up(n_img, tile_m)

    # bf16 pre-padded operands (halves HBM->VMEM DMA and resident VMEM).
    img_p = _pad2(image_features, nm_pad, k_pad, bf16)
    txt_p = _pad2(text_embeddings, nt_pad, td_pad, bf16)
    wi_p = _pad2(w_img, k_pad, PROJ_DIM, bf16)
    wt_p = _pad2(w_txt, td_pad, PROJ_DIM, bf16)
    bi = b_img.reshape(1, PROJ_DIM).astype(f32)
    bt = b_txt.reshape(1, PROJ_DIM).astype(f32)
    # Additive key mask for padded text rows; must stay f32 (-1e30 !in bf16).
    mask = jnp.where(jnp.arange(nt_pad) < n_txt, 0.0, -1e30).astype(f32)[None, :]

    # Fused-scores path is a FLOP win when projection K is small or #keys is
    # small; otherwise keep the two-GEMM form (review caveat).
    use_fused = (k_pad <= 256) or (nt_pad <= 128)
    noarg = lambda: (0, 0)

    if use_fused:
        bi8 = jnp.broadcast_to(bi, (8, PROJ_DIM))  # sublane-friendly bias tile
        s_w, s_bias = pl.pallas_call(
            fused_prep_kernel,
            out_shape=(jax.ShapeDtypeStruct((k_pad, nt_pad), bf16),
                       jax.ShapeDtypeStruct((1, nt_pad), f32)),
            in_specs=[pl.BlockSpec((nt_pad, td_pad), noarg),
                      pl.BlockSpec((td_pad, PROJ_DIM), noarg),
                      pl.BlockSpec((1, PROJ_DIM), noarg),
                      pl.BlockSpec((k_pad, PROJ_DIM), noarg),
                      pl.BlockSpec((8, PROJ_DIM), noarg),
                      pl.BlockSpec((1, nt_pad), noarg)],
            out_specs=(pl.BlockSpec((k_pad, nt_pad), noarg),
                       pl.BlockSpec((1, nt_pad), noarg)),
            compiler_params=pltpu.CompilerParams(vmem_limit_bytes=vmem_limit),
        )(txt_p, wt_p, bt, wi_p, bi8, mask)
        main_inputs = (img_p, s_w, s_bias, txt_p)
    else:
        text_proj = pl.pallas_call(
            text_proj_kernel,
            out_shape=jax.ShapeDtypeStruct((nt_pad, PROJ_DIM), bf16),
            in_specs=[pl.BlockSpec((nt_pad, td_pad), noarg),
                      pl.BlockSpec((td_pad, PROJ_DIM), noarg),
                      pl.BlockSpec((1, PROJ_DIM), noarg)],
            out_specs=pl.BlockSpec((nt_pad, PROJ_DIM), noarg),
            compiler_params=pltpu.CompilerParams(vmem_limit_bytes=vmem_limit),
        )(txt_p, wt_p, bt)
        main_inputs = (img_p, wi_p, bi, text_proj, mask, txt_p)

    # TODO(synk): for very large N_txt on v7x (64 MiB/TC), add a second
    # "arbitrary" KV grid axis with online softmax instead of keeping the whole
    # text block resident; also sweep pl.Buffered(3) on the streamed image spec.
    def build_main(single_buffer):
        # Grid-invariant operands stay pinned at block (0,0); optionally request
        # a single VMEM buffer for them (default double-buffering wastes VMEM on
        # blocks that never change — matters most on v7x's 64 MiB/TC).
        maybe = {"pipeline_mode": pl.Buffered(1)} if single_buffer else {}
        inv = lambda shape: pl.BlockSpec(shape, lambda i: (0, 0), **maybe)
        img_spec = pl.BlockSpec((tile_m, k_pad), lambda i: (i, 0))
        if use_fused:
            kernel = fused_attn_kernel
            in_specs = [img_spec, inv((k_pad, nt_pad)), inv((1, nt_pad)),
                        inv((nt_pad, td_pad))]
        else:
            kernel = general_attn_kernel
            in_specs = [img_spec, inv((k_pad, PROJ_DIM)), inv((1, PROJ_DIM)),
                        inv((nt_pad, PROJ_DIM)), inv((1, nt_pad)),
                        inv((nt_pad, td_pad))]
        return pl.pallas_call(
            kernel,
            out_shape=jax.ShapeDtypeStruct((nm_pad, td_pad), f32),
            grid=(nm_pad // tile_m,),
            in_specs=in_specs,
            out_specs=pl.BlockSpec((tile_m, td_pad), lambda i: (i, 0)),
            compiler_params=pltpu.CompilerParams(
                dimension_semantics=("parallel",),
                vmem_limit_bytes=vmem_limit),
        )

    try:
        out_p = build_main(single_buffer=True)(*main_inputs)
    except Exception:
        # pl.Buffered(1) not supported by this jax/libtpu combo: fall back to
        # default double-buffered specs (correctness identical).
        out_p = build_main(single_buffer=False)(*main_inputs)

    return out_p[:n_img, :text_dim]


# ---------------------------------------------------------------------------
# Params / references
# ---------------------------------------------------------------------------
def init_params(key, feature_dim, text_dim, proj_dim=PROJ_DIM):
    # PyTorch-Linear-like uniform init: U(-1/sqrt(fan_in), +1/sqrt(fan_in)).
    k1, k2, k3, k4 = jax.random.split(key, 4)
    bi_f = 1.0 / jnp.sqrt(jnp.float32(feature_dim))
    bt_f = 1.0 / jnp.sqrt(jnp.float32(text_dim))
    w_img = jax.random.uniform(k1, (feature_dim, proj_dim), jnp.float32, -bi_f, bi_f)
    b_img = jax.random.uniform(k2, (1, proj_dim), jnp.float32, -bi_f, bi_f)
    w_txt = jax.random.uniform(k3, (text_dim, proj_dim), jnp.float32, -bt_f, bt_f)
    b_txt = jax.random.uniform(k4, (1, proj_dim), jnp.float32, -bt_f, bt_f)
    return w_img, b_img, w_txt, b_txt


def reference_f32(image_features, text_embeddings, w_img, b_img, w_txt, b_txt):
    image_proj = image_features @ w_img + b_img
    text_proj = text_embeddings @ w_txt + b_txt
    scores = image_proj @ text_proj.T
    attn = jax.nn.softmax(scores, axis=-1)
    return attn @ text_embeddings


def reference_matched(image_features, text_embeddings, w_img, b_img, w_txt,
                      b_txt):
    """Precision-matched reference for the fused kernel path (bf16 GEMM casts)."""
    bf, f32 = jnp.bfloat16, jnp.float32
    tproj = jnp.dot(text_embeddings.astype(bf), w_txt.astype(bf),
                    preferred_element_type=f32) + b_txt
    s_w = jnp.dot(w_img.astype(bf), tproj.astype(bf).T,
                  preferred_element_type=f32).astype(bf)
    s_bias = jnp.dot(b_img, tproj.T)
    scores = jnp.dot(image_features.astype(bf), s_w,
                     preferred_element_type=f32) + s_bias
    attn = jax.nn.softmax(scores, axis=-1)
    return jnp.dot(attn.astype(bf), text_embeddings.astype(bf),
                   preferred_element_type=f32)


# ---------------------------------------------------------------------------
if __name__ == "__main__":
    feature_dim, text_dim = 32, 32
    n_img, n_txt = 16, 8

    key = jax.random.PRNGKey(0)
    k_img, k_txt, k_params = jax.random.split(key, 3)
    image_features = jax.random.normal(k_img, (n_img, feature_dim), jnp.float32)
    text_embeddings = jax.random.normal(k_txt, (n_txt, text_dim), jnp.float32)
    w_img, b_img, w_txt, b_txt = init_params(k_params, feature_dim, text_dim)

    out = cross_attention(image_features, text_embeddings, w_img, b_img,
                          w_txt, b_txt)
    out = jax.block_until_ready(out)
    assert out.shape == (n_img, text_dim)

    # primary check: precision-matched (bf16-GEMM, fused-path) reference
    ref_m = reference_matched(image_features, text_embeddings, w_img, b_img,
                              w_txt, b_txt)
    assert jnp.allclose(out, ref_m, atol=2e-2, rtol=2e-2), \
        "mismatch vs bf16-matched reference"

    # sanity check: full-f32 module semantics, loose tol (bf16 GEMM error)
    ref_f = reference_f32(image_features, text_embeddings, w_img, b_img,
                          w_txt, b_txt)
    assert jnp.allclose(out, ref_f, atol=2e-1, rtol=2e-1), \
        "mismatch vs f32 reference"

    print("KERNEL_OK")
</pallas_src>

<mosaic_0001>
module attributes {stable_mosaic.version = 11 : i64} {
  func.func @fused_prep_kernel(%arg0: memref<128x128xbf16, #tpu.memory_space<vmem>>, %arg1: memref<128x128xbf16, #tpu.memory_space<vmem>>, %arg2: memref<1x128xf32, #tpu.memory_space<vmem>>, %arg3: memref<128x128xbf16, #tpu.memory_space<vmem>>, %arg4: memref<8x128xf32, #tpu.memory_space<vmem>>, %arg5: memref<1x128xf32, #tpu.memory_space<vmem>>, %arg6: memref<128x128xbf16, #tpu.memory_space<vmem>>, %arg7: memref<1x128xf32, #tpu.memory_space<vmem>>) attributes {dimension_semantics = [], scalar_prefetch = 0 : i64, scratch_operands = 0 : i64, tpu.core_type = #tpu.core_type<tc>} {
    %c0 = arith.constant 0 : index
    %c0_0 = arith.constant 0 : index
    %0 = vector.load %arg0[%c0, %c0_0] : memref<128x128xbf16, #tpu.memory_space<vmem>>, vector<128x128xbf16>
    %c0_1 = arith.constant 0 : index
    %c0_2 = arith.constant 0 : index
    %1 = vector.load %arg1[%c0_1, %c0_2] : memref<128x128xbf16, #tpu.memory_space<vmem>>, vector<128x128xbf16>
    %cst = arith.constant dense<0.000000e+00> : vector<128x128xf32>
    %2 = tpu.matmul %0, %1, %cst {dimension_numbers = #tpu.dot_dimension_numbers<[1], [0], [0], [1], [0, 0, 1, 1], [], []>} : vector<128x128xbf16>, vector<128x128xbf16>, vector<128x128xf32> -> vector<128x128xf32>
    %c0_3 = arith.constant 0 : index
    %c0_4 = arith.constant 0 : index
    %3 = vector.load %arg2[%c0_3, %c0_4] : memref<1x128xf32, #tpu.memory_space<vmem>>, vector<1x128xf32>
    %4 = vector.broadcast %3 : vector<1x128xf32> to vector<128x128xf32>
    %5 = arith.addf %2, %4 : vector<128x128xf32>
    %c0_5 = arith.constant 0 : index
    %c0_6 = arith.constant 0 : index
    %6 = vector.load %arg3[%c0_5, %c0_6] : memref<128x128xbf16, #tpu.memory_space<vmem>>, vector<128x128xbf16>
    %7 = arith.truncf %5 : vector<128x128xf32> to vector<128x128xbf16>
    %cst_7 = arith.constant dense<0.000000e+00> : vector<128x128xf32>
    %8 = tpu.matmul %6, %7, %cst_7 {dimension_numbers = #tpu.dot_dimension_numbers<[1], [1], [0], [0], [0, 0, 1, 0], [], []>} : vector<128x128xbf16>, vector<128x128xbf16>, vector<128x128xf32> -> vector<128x128xf32>
    %9 = arith.truncf %8 : vector<128x128xf32> to vector<128x128xbf16>
    %c0_8 = arith.constant 0 : index
    %c0_9 = arith.constant 0 : index
    %10 = vector.load %arg6[%c0_8, %c0_9] : memref<128x128xbf16, #tpu.memory_space<vmem>>, vector<128x128xbf16>
    tpu.vector_store %arg6[%c0_8, %c0_9], %9 {strides = array<i32>} : memref<128x128xbf16, #tpu.memory_space<vmem>>, vector<128x128xbf16>,
    %c0_10 = arith.constant 0 : index
    %c0_11 = arith.constant 0 : index
    %11 = vector.load %arg4[%c0_10, %c0_11] : memref<8x128xf32, #tpu.memory_space<vmem>>, vector<8x128xf32>
    %cst_12 = arith.constant dense<0.000000e+00> : vector<8x128xf32>
    %12 = tpu.matmul %11, %5, %cst_12 {dimension_numbers = #tpu.dot_dimension_numbers<[1], [1], [0], [0], [0, 0, 1, 0], [], []>} : vector<8x128xf32>, vector<128x128xf32>, vector<8x128xf32> -> vector<8x128xf32>
    %13 = vector.extract_strided_slice %12 {offsets = [0, 0], sizes = [1, 128], strides = [1, 1]} : vector<8x128xf32> to vector<1x128xf32>
    %c0_13 = arith.constant 0 : index
    %c0_14 = arith.constant 0 : index
    %14 = vector.load %arg5[%c0_13, %c0_14] : memref<1x128xf32, #tpu.memory_space<vmem>>, vector<1x128xf32>
    %15 = arith.addf %13, %14 : vector<1x128xf32>
    %c0_15 = arith.constant 0 : index
    %c0_16 = arith.constant 0 : index
    %16 = vector.load %arg7[%c0_15, %c0_16] : memref<1x128xf32, #tpu.memory_space<vmem>>, vector<1x128xf32>
    tpu.vector_store %arg7[%c0_15, %c0_16], %15 {strides = array<i32>} : memref<1x128xf32, #tpu.memory_space<vmem>>, vector<1x128xf32>,
    return
  }
}

</mosaic_0001>

<llo_original>
// kernel: tpu_custom_call.1
$region0: #{tpu_custom_call.1}
  #allocation0 [shape = 'u32[]', space=smem, size = 0x4, offset = 0x4, fixed_abs, tag = 'smem constant byte address 0x4 - core index']
  #allocation1 [shape = 'u32[144,128]{1,0:T(1,128)}', space=vmem, size = 0x12000, scoped, tag = 'internal scratch']
  %s0 = inlined_call_operand.hbm [shape: bf16[128,128], index: 0, kind: input, shape index: {}]
  %s1 = inlined_call_operand.hbm [shape: bf16[128,128], index: 1, kind: input, shape index: {}]
  %s2 = inlined_call_operand.vmem [shape: f32[1,128], index: 2, kind: input, shape index: {}]
  %s3 = inlined_call_operand.hbm [shape: bf16[128,128], index: 3, kind: input, shape index: {}]
  %s4 = inlined_call_operand.vmem [shape: f32[8,128], index: 4, kind: input, shape index: {}]
  %s5 = inlined_call_operand.vmem [shape: f32[1,128], index: 5, kind: input, shape index: {}]
  %s6 = inlined_call_operand.hbm [shape: bf16[128,128], index: 6, kind: output, shape index: {0}]
  %s7 = inlined_call_operand.hbm [shape: f32[1,128], index: 7, kind: output, shape index: {1}]
  %8 = xla_tuple %s6, %s7
  %s9 = sld [smem:[#allocation0]]
  $region54: #{tpu_custom_call.1} parent=0
    _
  %s11 = ssub.s32 1, %s9
  %s12 = scalar_select 0, %s11, %s9
  $region1: #{tpu_custom_call.1} parent=0
    #allocation2 [shape = 'u8[32768]{0}', space=vmem, size = 0x8000, scoped, tag = 'input window, operand 0, single buffered']
    #allocation3 [shape = 's32[1]{0}', space=sflag, size = 0x4, scoped, tag = 'scoped memory for tpu_custom_call.1']
    #allocation4 [shape = 's32[1]{0}', space=sflag, size = 0x4, scoped, tag = 'scoped memory for tpu_custom_call.1']
    #allocation5 [shape = 'u8[32768]{0}', space=vmem, size = 0x8000, scoped, tag = 'input window, operand 1, single buffered']
    #allocation6 [shape = 's32[1]{0}', space=sflag, size = 0x4, scoped, tag = 'scoped memory for tpu_custom_call.1']
    #allocation7 [shape = 'u8[32768]{0}', space=vmem, size = 0x8000, scoped, tag = 'input window, operand 3, single buffered']
    #allocation8 [shape = 'u8[32768]{0}', space=vmem, size = 0x8000, scoped, tag = 'output window, operand 0, single buffered']
    #allocation9 [shape = 'u8[512]{0}', space=vmem, size = 0x400, scoped, tag = 'output window, operand 1, single buffered']
    #allocation10 [shape = 's32[1]{0}', space=sflag, size = 0x4, scoped, tag = 'scoped memory for tpu_custom_call.1']
    %13 = vsyncpa [#allocation3], 0
    %14 = vsyncpa [#allocation6], 0
    %15 = vsyncpa [#allocation4], 0
    %16 = vsyncpa [#allocation10], 0
    // Predicated region
    $region2: #{tpu_custom_call.1} parent=1 // pred_check
      _
    $region3: #{tpu_custom_call.1} parent=1 // pred_check_branch
      %18 = sbr.rel (0) target = $region5
    $region4: #{tpu_custom_call.1} parent=1 // pred_region
      %s20 = ssub.s32 1024, 1024
      %21 = vsyncadd [#allocation3], %s20
      %s22 = sshll.u32 [#allocation2], 4
      %s23 = int_to_ptr.vmem [resolvable:$true] %s22
      %28 = dma.hbm_to_vmem [thread:$0]  %s0, 1024, %s23, [#allocation3], 64, 64, 4
    $region5: #{tpu_custom_call.1} parent=1 // pred_fallthru
      _
    // Predicated region
    $region6: #{tpu_custom_call.1} parent=1 // pred_check
      _
    $region7: #{tpu_custom_call.1} parent=1 // pred_check_branch
      %30 = sbr.rel (0) target = $region9
    $region8: #{tpu_custom_call.1} parent=1 // pred_region
      %s32 = ssub.s32 1024, 1024
      %33 = vsyncadd [#allocation6], %s32
      %s34 = sshll.u32 [#allocation5], 4
      %s35 = int_to_ptr.vmem [resolvable:$true] %s34
      %40 = dma.hbm_to_vmem [thread:$0]  %s1, 1024, %s35, [#allocation6], 64, 64, 4
    $region9: #{tpu_custom_call.1} parent=1 // pred_fallthru
      _
    // Predicated region
    $region10: #{tpu_custom_call.1} parent=1 // pred_check
      _
    $region11: #{tpu_custom_call.1} parent=1 // pred_check_branch
      %42 = sbr.rel (0) target = $region13
    $region12: #{tpu_custom_call.1} parent=1 // pred_region
      _
    $region13: #{tpu_custom_call.1} parent=1 // pred_fallthru
      _
    // Predicated region
    $region14: #{tpu_custom_call.1} parent=1 // pred_check
      _
    $region15: #{tpu_custom_call.1} parent=1 // pred_check_branch
      %44 = sbr.rel (0) target = $region17
    $region16: #{tpu_custom_call.1} parent=1 // pred_region
      %s46 = ssub.s32 1024, 1024
      %47 = vsyncadd [#allocation6], %s46
      %s48 = sshll.u32 [#allocation7], 4
      %s49 = int_to_ptr.vmem [resolvable:$true] %s48
      %54 = dma.hbm_to_vmem [thread:$0]  %s3, 1024, %s49, [#allocation6], 64, 64, 4
    $region17: #{tpu_custom_call.1} parent=1 // pred_fallthru
      _
    // Predicated region
    $region18: #{tpu_custom_call.1} parent=1 // pred_check
      _
    $region19: #{tpu_custom_call.1} parent=1 // pred_check_branch
      %56 = sbr.rel (0) target = $region21
    $region20: #{tpu_custom_call.1} parent=1 // pred_region
      _
    $region21: #{tpu_custom_call.1} parent=1 // pred_fallthru
      _
    // Predicated region
    $region22: #{tpu_custom_call.1} parent=1 // pred_check
      _
    $region23: #{tpu_custom_call.1} parent=1 // pred_check_branch
      %58 = sbr.rel (0) target = $region25
    $region24: #{tpu_custom_call.1} parent=1 // pred_region
      _
    $region25: #{tpu_custom_call.1} parent=1 // pred_fallthru
      _
    // Predicated region
    $region26: #{tpu_custom_call.1} parent=1 // pred_check
      _
    $region27: #{tpu_custom_call.1} parent=1 // pred_check_branch
      %60 = sbr.rel (0) target = $region29
    $region28: #{tpu_custom_call.1} parent=1 // pred_region
      %61 = dma.done [#allocation3], 1024
    $region29: #{tpu_custom_call.1} parent=1 // pred_fallthru
      _
    // Predicated region
    $region30: #{tpu_custom_call.1} parent=1 // pred_check
      _
    $region31: #{tpu_custom_call.1} parent=1 // pred_check_branch
      %63 = sbr.rel (0) target = $region33
    $region32: #{tpu_custom_call.1} parent=1 // pred_region
      %64 = dma.done [#allocation6], 1024
    $region33: #{tpu_custom_call.1} parent=1 // pred_fallthru
      _
    // Predicated region
    $region34: #{tpu_custom_call.1} parent=1 // pred_check
      _
    $region35: #{tpu_custom_call.1} parent=1 // pred_check_branch
      %66 = sbr.rel (0) target = $region37
    $region36: #{tpu_custom_call.1} parent=1 // pred_region
      %67 = dma.done [#allocation6], 1024
    $region37: #{tpu_custom_call.1} parent=1 // pred_fallthru
      _
    %v69 = vld [vmem:[#allocation2] sm:$0xf]
    %v70 = vld [vmem:[#allocation2 + $0x4] sm:$0xf]
    %v71 = vld [vmem:[#allocation2 + $0x8] sm:$0xf]
    %v72 = vld [vmem:[#allocation2 + $0xc] sm:$0xf]
    %v73 = vld [vmem:[#allocation2 + $0x10] sm:$0xf]
    %v74 = vld [vmem:[#allocation2 + $0x14] sm:$0xf]
    %v75 = vld [vmem:[#allocation2 + $0x18] sm:$0xf]
    %v76 = vld [vmem:[#allocation2 + $0x1c] sm:$0xf]
    %v77 = vld [vmem:[#allocation2 + $0x20] sm:$0xf]
    %v78 = vld [vmem:[#allocation2 + $0x24] sm:$0xf]
    %v79 = vld [vmem:[#allocation2 + $0x28] sm:$0xf]
    %v80 = vld [vmem:[#allocation2 + $0x2c] sm:$0xf]
    %v81 = vld [vmem:[#allocation2 + $0x30] sm:$0xf]
    %v82 = vld [vmem:[#allocation2 + $0x34] sm:$0xf]
    %v83 = vld [vmem:[#allocation2 + $0x38] sm:$0xf]
    %v84 = vld [vmem:[#allocation2 + $0x3c] sm:$0xf]
    %v85 = vld [vmem:[#allocation5] sm:$0xf]
    %v86 = vld [vmem:[#allocation5 + $0x4] sm:$0xf]
    %v87 = vld [vmem:[#allocation5 + $0x8] sm:$0xf]
    %v88 = vld [vmem:[#allocation5 + $0xc] sm:$0xf]
    %v89 = vld [vmem:[#allocation5 + $0x10] sm:$0xf]
    %v90 = vld [vmem:[#allocation5 + $0x14] sm:$0xf]
    %v91 = vld [vmem:[#allocation5 + $0x18] sm:$0xf]
    %v92 = vld [vmem:[#allocation5 + $0x1c] sm:$0xf]
    %v93 = vld [vmem:[#allocation5 + $0x20] sm:$0xf]
    %v94 = vld [vmem:[#allocation5 + $0x24] sm:$0xf]
    %v95 = vld [vmem:[#allocation5 + $0x28] sm:$0xf]
    %v96 = vld [vmem:[#allocation5 + $0x2c] sm:$0xf]
    %v97 = vld [vmem:[#allocation5 + $0x30] sm:$0xf]
    %v98 = vld [vmem:[#allocation5 + $0x34] sm:$0xf]
    %v99 = vld [vmem:[#allocation5 + $0x38] sm:$0xf]
    %v100 = vld [vmem:[#allocation5 + $0x3c] sm:$0xf]
    %v101 = vld [vmem:[%s2] sm:$0x1]
    %v103 = vlaneseq
    %v104 = vshrl.u32 %v103, 7
    %v105 = vsub.s32 0, %v104
    %v106 = vrot.slane %v101, %v105
    %v124 = vunpack.c.l.b16 %v69
    %v125 = vunpack.c.l.b16 %v70
    %v126 = vunpack.c.l.b16 %v71
    %v127 = vunpack.c.l.b16 %v72
    %v128 = vunpack.c.l.b16 %v73
    %v129 = vunpack.c.l.b16 %v74
    %v130 = vunpack.c.l.b16 %v75
    %v131 = vunpack.c.l.b16 %v76
    %v132 = vunpack.c.l.b16 %v77
    %v133 = vunpack.c.l.b16 %v78
    %v134 = vunpack.c.l.b16 %v79
    %v135 = vunpack.c.l.b16 %v80
    %v136 = vunpack.c.l.b16 %v81
    %v137 = vunpack.c.l.b16 %v82
    %v138 = vunpack.c.l.b16 %v83
    %v139 = vunpack.c.l.b16 %v84
    %v140 = vpack.c.b16 %v125, %v124
    %v141 = vpack.c.b16 %v127, %v126
    %v142 = vpack.c.b16 %v129, %v128
    %v143 = vpack.c.b16 %v131, %v130
    %v144 = vpack.c.b16 %v133, %v132
    %v145 = vpack.c.b16 %v135, %v134
    %v146 = vpack.c.b16 %v137, %v136
    %v147 = vpack.c.b16 %v139, %v138
    %v172 = vunpack.c.l.b16 %v85
    %v173 = vunpack.c.l.b16 %v86
    %v174 = vunpack.c.l.b16 %v87
    %v175 = vunpack.c.l.b16 %v88
    %v176 = vunpack.c.l.b16 %v89
    %v177 = vunpack.c.l.b16 %v90
    %v178 = vunpack.c.l.b16 %v91
    %v179 = vunpack.c.l.b16 %v92
    %v180 = vunpack.c.l.b16 %v93
    %v181 = vunpack.c.l.b16 %v94
    %v182 = vunpack.c.l.b16 %v95
    %v183 = vunpack.c.l.b16 %v96
    %v184 = vunpack.c.l.b16 %v97
    %v185 = vunpack.c.l.b16 %v98
    %v186 = vunpack.c.l.b16 %v99
    %v187 = vunpack.c.l.b16 %v100
    %v188 = vpack.c.b16 %v173, %v172
    %v189 = vpack.c.b16 %v175, %v174
    %v190 = vpack.c.b16 %v177, %v176
    %v191 = vpack.c.b16 %v179, %v178
    %v192 = vpack.c.b16 %v181, %v180
    %v193 = vpack.c.b16 %v183, %v182
    %v194 = vpack.c.b16 %v185, %v184
    %v195 = vpack.c.b16 %v187, %v186
    %204 = vmatprep.subr.bf16.mxu0 0
    %205 = vmatpush1.bf16.msra.mxu0 %v188
    %206 = vmatprep.subr.bf16.mxu0 0
    %207 = vmatpush1.bf16.msra.mxu0 %v189
    %208 = vmatprep.subr.bf16.mxu0 0
    %209 = vmatpush1.bf16.msra.mxu0 %v190
    %210 = vmatprep.subr.bf16.mxu0 0
    %211 = vmatpush1.bf16.msra.mxu0 %v191
    %212 = vmatprep.subr.bf16.mxu0 0
    %213 = vmatpush1.bf16.msra.mxu0 %v192
    %214 = vmatprep.subr.bf16.mxu0 0
    %215 = vmatpush1.bf16.msra.mxu0 %v193
    %216 = vmatprep.subr.bf16.mxu0 0
    %217 = vmatpush1.bf16.msra.mxu0 %v194
    %218 = vmatprep.subr.bf16.mxu0 0
    %219 = vmatpush1.bf16.msra.mxu0 %v195
    %220 = vmatprep.subr.bf16.mxu0 0
    %221 = vmatpush1.bf16.msra.mxu0 0
    %222 = vmatprep.subr.bf16.mxu0 0
    %223 = vmatpush1.bf16.msra.mxu0 0
    %224 = vmatprep.subr.bf16.mxu0 0
    %225 = vmatpush1.bf16.msra.mxu0 0
    %226 = vmatprep.subr.bf16.mxu0 0
    %227 = vmatpush1.bf16.msra.mxu0 0
    %228 = vmatprep.subr.bf16.mxu0 0
    %229 = vmatpush1.bf16.msra.mxu0 0
    %230 = vmatprep.subr.bf16.mxu0 0
    %231 = vmatpush1.bf16.msra.mxu0 0
    %232 = vmatprep.subr.bf16.mxu0 0
    %233 = vmatpush1.bf16.msra.mxu0 0
    %234 = vmatprep.subr.bf16.mxu0 0
    %235 = vmatpush1.bf16.msra.mxu0 0
    %236 = vmatprep.mubr.bf16.mxu0 0
    %237 = vmatmul.mubr.bf16.gmra.mrb[0].mxu0 %v140
    %v238 = vpop.f32.mrb[0].mxu0
    %v239 = vadd.f32 %v106, %v238
    %v240 = vpop.f32.mrb[0].mxu0
    %v241 = vpop.f32.mrb[0].mxu0
    %v242 = vadd.f32 %v106, %v241
    %v243 = vpop.f32.mrb[0].mxu0
    %244 = vmatprep.mubr.bf16.mxu0 0
    %245 = vmatmul.mubr.bf16.gmra.mrb[0].mxu0 %v141
    %v246 = vpop.f32.mrb[0].mxu0
    %v247 = vadd.f32 %v106, %v246
    %v248 = vpop.f32.mrb[0].mxu0
    %v249 = vpop.f32.mrb[0].mxu0
    %v250 = vadd.f32 %v106, %v249
    %v251 = vpop.f32.mrb[0].mxu0
    %252 = vmatprep.mubr.bf16.mxu0 0
    %253 = vmatmul.mubr.bf16.gmra.mrb[0].mxu0 %v142
    %v254 = vpop.f32.mrb[0].mxu0
    %v255 = vadd.f32 %v106, %v254
    %v256 = vpop.f32.mrb[0].mxu0
    %v257 = vpop.f32.mrb[0].mxu0
    %v258 = vadd.f32 %v106, %v257
    %v259 = vpop.f32.mrb[0].mxu0
    %260 = vmatprep.mubr.bf16.mxu0 0
    %261 = vmatmul.mubr.bf16.gmra.mrb[0].mxu0 %v143
    %v262 = vpop.f32.mrb[0].mxu0
    %v263 = vadd.f32 %v106, %v262
    %v264 = vpop.f32.mrb[0].mxu0
    %v265 = vpop.f32.mrb[0].mxu0
    %v266 = vadd.f32 %v106, %v265
    %v267 = vpop.f32.mrb[0].mxu0
    %268 = vmatprep.mubr.bf16.mxu0 0
    %269 = vmatmul.mubr.bf16.gmra.mrb[0].mxu0 %v144
    %v270 = vpop.f32.mrb[0].mxu0
    %v271 = vadd.f32 %v106, %v270
    %v272 = vpop.f32.mrb[0].mxu0
    %v273 = vpop.f32.mrb[0].mxu0
    %v274 = vadd.f32 %v106, %v273
    %v275 = vpop.f32.mrb[0].mxu0
    %276 = vmatprep.mubr.bf16.mxu0 0
    %277 = vmatmul.mubr.bf16.gmra.mrb[0].mxu0 %v145
    %v278 = vpop.f32.mrb[0].mxu0
    %v279 = vadd.f32 %v106, %v278
    %v280 = vpop.f32.mrb[0].mxu0
    %v281 = vpop.f32.mrb[0].mxu0
    %v282 = vadd.f32 %v106, %v281
    %v283 = vpop.f32.mrb[0].mxu0
    %284 = vmatprep.mubr.bf16.mxu0 0
    %285 = vmatmul.mubr.bf16.gmra.mrb[0].mxu0 %v146
    %v286 = vpop.f32.mrb[0].mxu0
    %v287 = vadd.f32 %v106, %v286
    %v288 = vpop.f32.mrb[0].mxu0
    %v289 = vpop.f32.mrb[0].mxu0
    %v290 = vadd.f32 %v106, %v289
    %v291 = vpop.f32.mrb[0].mxu0
    %292 = vmatprep.mubr.bf16.mxu0 0
    %293 = vmatmul.mubr.bf16.gmra.mrb[0].mxu0 %v147
    %v294 = vpop.f32.mrb[0].mxu0
    %v295 = vadd.f32 %v106, %v294
    %v296 = vpop.f32.mrb[0].mxu0
    %v297 = vpop.f32.mrb[0].mxu0
    %v298 = vadd.f32 %v106, %v297
    %v299 = vpop.f32.mrb[0].mxu0
    %300 = vdwg.mxu0
    %v301 = vld [vmem:[#allocation7] sm:$0xf]
    %v302 = vld [vmem:[#allocation7 + $0x4] sm:$0xf]
    %v303 = vld [vmem:[#allocation7 + $0x8] sm:$0xf]
    %v304 = vld [vmem:[#allocation7 + $0xc] sm:$0xf]
    %v305 = vld [vmem:[#allocation7 + $0x10] sm:$0xf]
    %v306 = vld [vmem:[#allocation7 + $0x14] sm:$0xf]
    %v307 = vld [vmem:[#allocation7 + $0x18] sm:$0xf]
    %v308 = vld [vmem:[#allocation7 + $0x1c] sm:$0xf]
    %v309 = vld [vmem:[#allocation7 + $0x20] sm:$0xf]
    %v310 = vld [vmem:[#allocation7 + $0x24] sm:$0xf]
    %v311 = vld [vmem:[#allocation7 + $0x28] sm:$0xf]
    %v312 = vld [vmem:[#allocation7 + $0x2c] sm:$0xf]
    %v313 = vld [vmem:[#allocation7 + $0x30] sm:$0xf]
    %v314 = vld [vmem:[#allocation7 + $0x34] sm:$0xf]
    %v315 = vld [vmem:[#allocation7 + $0x38] sm:$0xf]
    %v316 = vld [vmem:[#allocation7 + $0x3c] sm:$0xf]
    %v317 = vpack.c.bf16 %v242, %v239
    %v318 = vpack.c.bf16 %v250, %v247
    %v319 = vpack.c.bf16 %v258, %v255
    %v320 = vpack.c.bf16 %v266, %v263
    %v321 = vpack.c.bf16 %v274, %v271
    %v322 = vpack.c.bf16 %v282, %v279
    %v323 = vpack.c.bf16 %v290, %v287
    %v324 = vpack.c.bf16 %v298, %v295
    %v341 = vunpack.c.l.b16 %v301
    %v342 = vunpack.c.l.b16 %v302
    %v343 = vunpack.c.l.b16 %v303
    %v344 = vunpack.c.l.b16 %v304
    %v345 = vunpack.c.l.b16 %v305
    %v346 = vunpack.c.l.b16 %v306
    %v347 = vunpack.c.l.b16 %v307
    %v348 = vunpack.c.l.b16 %v308
    %v349 = vunpack.c.l.b16 %v309
    %v350 = vunpack.c.l.b16 %v310
    %v351 = vunpack.c.l.b16 %v311
    %v352 = vunpack.c.l.b16 %v312
    %v353 = vunpack.c.l.b16 %v313
    %v354 = vunpack.c.l.b16 %v314
    %v355 = vunpack.c.l.b16 %v315
    %v356 = vunpack.c.l.b16 %v316
    %v357 = vpack.c.b16 %v342, %v341
    %v358 = vpack.c.b16 %v344, %v343
    %v359 = vpack.c.b16 %v346, %v345
    %v360 = vpack.c.b16 %v348, %v347
    %v361 = vpack.c.b16 %v350, %v349
    %v362 = vpack.c.b16 %v352, %v351
    %v363 = vpack.c.b16 %v354, %v353
    %v364 = vpack.c.b16 %v356, %v355
    %373 = vmatprep.subr.bf16.mxu0 0
    %374 = vmatpush1.bf16.xpose.msra.mxu0 %v317
    %375 = vmatprep.subr.bf16.mxu0 0
    %376 = vmatpush1.bf16.xpose.msra.mxu0 %v318
    %377 = vmatprep.subr.bf16.mxu0 0
    %378 = vmatpush1.bf16.xpose.msra.mxu0 %v319
    %379 = vmatprep.subr.bf16.mxu0 0
    %380 = vmatpush1.bf16.xpose.msra.mxu0 %v320
    %381 = vmatprep.subr.bf16.mxu0 0
    %382 = vmatpush1.bf16.xpose.msra.mxu0 %v321
    %383 = vmatprep.subr.bf16.mxu0 0
    %384 = vmatpush1.bf16.xpose.msra.mxu0 %v322
    %385 = vmatprep.subr.bf16.mxu0 0
    %386 = vmatpush1.bf16.xpose.msra.mxu0 %v323
    %387 = vmatprep.subr.bf16.mxu0 0
    %388 = vmatpush1.bf16.xpose.msra.mxu0 %v324
    %389 = vmatprep.subr.bf16.mxu0 0
    %390 = vmatpush1.bf16.xpose.msra.mxu0 0
    %391 = vmatprep.subr.bf16.mxu0 0
    %392 = vmatpush1.bf16.xpose.msra.mxu0 0
    %393 = vmatprep.subr.bf16.mxu0 0
    %394 = vmatpush1.bf16.xpose.msra.mxu0 0
    %395 = vmatprep.subr.bf16.mxu0 0
    %396 = vmatpush1.bf16.xpose.msra.mxu0 0
    %397 = vmatprep.subr.bf16.mxu0 0
    %398 = vmatpush1.bf16.xpose.msra.mxu0 0
    %399 = vmatprep.subr.bf16.mxu0 0
    %400 = vmatpush1.bf16.xpose.msra.mxu0 0
    %401 = vmatprep.subr.bf16.mxu0 0
    %402 = vmatpush1.bf16.xpose.msra.mxu0 0
    %403 = vmatprep.subr.bf16.mxu0 0
    %404 = vmatpush1.bf16.xpose.msra.mxu0 0
    %405 = vmatprep.mubr.bf16.mxu0 0
    %406 = vmatmul.mubr.bf16.gmra.mrb[0].mxu0 %v357
    %v407 = vpop.f32.mrb[0].mxu0
    %v408 = vadd.f32 0.0, %v407
    %v409 = vpop.f32.mrb[0].mxu0
    %v410 = vpop.f32.mrb[0].mxu0
    %v411 = vadd.f32 0.0, %v410
    %v412 = vpop.f32.mrb[0].mxu0
    %413 = vmatprep.mubr.bf16.mxu0 0
    %414 = vmatmul.mubr.bf16.gmra.mrb[0].mxu0 %v358
    %v415 = vpop.f32.mrb[0].mxu0
    %v416 = vadd.f32 0.0, %v415
    %v417 = vpop.f32.mrb[0].mxu0
    %v418 = vpop.f32.mrb[0].mxu0
    %v419 = vadd.f32 0.0, %v418
    %v420 = vpop.f32.mrb[0].mxu0
    %421 = vmatprep.mubr.bf16.mxu0 0
    %422 = vmatmul.mubr.bf16.gmra.mrb[0].mxu0 %v359
    %v423 = vpop.f32.mrb[0].mxu0
    %v424 = vadd.f32 0.0, %v423
    %v425 = vpop.f32.mrb[0].mxu0
    %v426 = vpop.f32.mrb[0].mxu0
    %v427 = vadd.f32 0.0, %v426
    %v428 = vpop.f32.mrb[0].mxu0
    %429 = vmatprep.mubr.bf16.mxu0 0
    %430 = vmatmul.mubr.bf16.gmra.mrb[0].mxu0 %v360
    %v431 = vpop.f32.mrb[0].mxu0
    %v432 = vadd.f32 0.0, %v431
    %v433 = vpop.f32.mrb[0].mxu0
    %v434 = vpop.f32.mrb[0].mxu0
    %v435 = vadd.f32 0.0, %v434
    %v436 = vpop.f32.mrb[0].mxu0
    %437 = vmatprep.mubr.bf16.mxu0 0
    %438 = vmatmul.mubr.bf16.gmra.mrb[0].mxu0 %v361
    %v439 = vpop.f32.mrb[0].mxu0
    %v440 = vadd.f32 0.0, %v439
    %v441 = vpop.f32.mrb[0].mxu0
    %v442 = vpop.f32.mrb[0].mxu0
    %v443 = vadd.f32 0.0, %v442
    %v444 = vpop.f32.mrb[0].mxu0
    %445 = vmatprep.mubr.bf16.mxu0 0
    %446 = vmatmul.mubr.bf16.gmra.mrb[0].mxu0 %v362
    %v447 = vpop.f32.mrb[0].mxu0
    %v448 = vadd.f32 0.0, %v447
    %v449 = vpop.f32.mrb[0].mxu0
    %v450 = vpop.f32.mrb[0].mxu0
    %v451 = vadd.f32 0.0, %v450
    %v452 = vpop.f32.mrb[0].mxu0
    %453 = vmatprep.mubr.bf16.mxu0 0
    %454 = vmatmul.mubr.bf16.gmra.mrb[0].mxu0 %v363
    %v455 = vpop.f32.mrb[0].mxu0
    %v456 = vadd.f32 0.0, %v455
    %v457 = vpop.f32.mrb[0].mxu0
    %v458 = vpop.f32.mrb[0].mxu0
    %v459 = vadd.f32 0.0, %v458
    %v460 = vpop.f32.mrb[0].mxu0
    %461 = vmatprep.mubr.bf16.mxu0 0
    %462 = vmatmul.mubr.bf16.gmra.mrb[0].mxu0 %v364
    %v463 = vpop.f32.mrb[0].mxu0
    %v464 = vadd.f32 0.0, %v463
    %v465 = vpop.f32.mrb[0].mxu0
    %v466 = vpop.f32.mrb[0].mxu0
    %v467 = vadd.f32 0.0, %v466
    %v468 = vpop.f32.mrb[0].mxu0
    %469 = vdwg.mxu0
    %v470 = vpack.c.bf16 %v411, %v408
    %v471 = vpack.c.bf16 %v419, %v416
    %v472 = vpack.c.bf16 %v427, %v424
    %v473 = vpack.c.bf16 %v435, %v432
    %v474 = vpack.c.bf16 %v443, %v440
    %v475 = vpack.c.bf16 %v451, %v448
    %v476 = vpack.c.bf16 %v459, %v456
    %v477 = vpack.c.bf16 %v467, %v464
    %v486 = vunpack.c.l.b16 %v470
    %v487 = vunpack.c.h.b16 %v470
    %v488 = vunpack.c.l.b16 %v471
    %v489 = vunpack.c.h.b16 %v471
    %v490 = vunpack.c.l.b16 %v472
    %v491 = vunpack.c.h.b16 %v472
    %v492 = vunpack.c.l.b16 %v473
    %v493 = vunpack.c.h.b16 %v473
    %v494 = vunpack.c.l.b16 %v474
    %v495 = vunpack.c.h.b16 %v474
    %v496 = vunpack.c.l.b16 %v475
    %v497 = vunpack.c.h.b16 %v475
    %v498 = vunpack.c.l.b16 %v476
    %v499 = vunpack.c.h.b16 %v476
    %v500 = vunpack.c.l.b16 %v477
    %v501 = vunpack.c.h.b16 %v477
    %v502 = vpack.c.b16 %v486, %v486
    %v503 = vpack.c.b16 %v487, %v487
    %v504 = vpack.c.b16 %v488, %v488
    %v505 = vpack.c.b16 %v489, %v489
    %v506 = vpack.c.b16 %v490, %v490
    %v507 = vpack.c.b16 %v491, %v491
    %v508 = vpack.c.b16 %v492, %v492
    %v509 = vpack.c.b16 %v493, %v493
    %v510 = vpack.c.b16 %v494, %v494
    %v511 = vpack.c.b16 %v495, %v495
    %v512 = vpack.c.b16 %v496, %v496
    %v513 = vpack.c.b16 %v497, %v497
    %v514 = vpack.c.b16 %v498, %v498
    %v515 = vpack.c.b16 %v499, %v499
    %v516 = vpack.c.b16 %v500, %v500
    %v517 = vpack.c.b16 %v501, %v501
    %534 = vst [vmem:[#allocation8] sm:$0xf] %v502
    %535 = vst [vmem:[#allocation8 + $0x4] sm:$0xf] %v503
    %536 = vst [vmem:[#allocation8 + $0x8] sm:$0xf] %v504
    %537 = vst [vmem:[#allocation8 + $0xc] sm:$0xf] %v505
    %538 = vst [vmem:[#allocation8 + $0x10] sm:$0xf] %v506
    %539 = vst [vmem:[#allocation8 + $0x14] sm:$0xf] %v507
    %540 = vst [vmem:[#allocation8 + $0x18] sm:$0xf] %v508
    %541 = vst [vmem:[#allocation8 + $0x1c] sm:$0xf] %v509
    %542 = vst [vmem:[#allocation8 + $0x20] sm:$0xf] %v510
    %543 = vst [vmem:[#allocation8 + $0x24] sm:$0xf] %v511
    %544 = vst [vmem:[#allocation8 + $0x28] sm:$0xf] %v512
    %545 = vst [vmem:[#allocation8 + $0x2c] sm:$0xf] %v513
    %546 = vst [vmem:[#allocation8 + $0x30] sm:$0xf] %v514
    %547 = vst [vmem:[#allocation8 + $0x34] sm:$0xf] %v515
    %548 = vst [vmem:[#allocation8 + $0x38] sm:$0xf] %v516
    %549 = vst [vmem:[#allocation8 + $0x3c] sm:$0xf] %v517
    %v550 = vld [vmem:[%s4] sm:$0xff]
    %551 = vmatprep.subr.mxu0 0.0
    %552 = vmatpush1.xpose.msra.mxu0 %v239
    %553 = vmatprep.subr.mxu0 0.0
    %554 = vmatpush1.xpose.msra.mxu0 %v242
    %555 = vmatprep.subr.mxu0 0.0
    %556 = vmatpush1.xpose.msra.mxu0 %v247
    %557 = vmatprep.subr.mxu0 0.0
    %558 = vmatpush1.xpose.msra.mxu0 %v250
    %559 = vmatprep.subr.mxu0 0.0
    %560 = vmatpush1.xpose.msra.mxu0 %v255
    %561 = vmatprep.subr.mxu0 0.0
    %562 = vmatpush1.xpose.msra.mxu0 %v258
    %563 = vmatprep.subr.mxu0 0.0
    %564 = vmatpush1.xpose.msra.mxu0 %v263
    %565 = vmatprep.subr.mxu0 0.0
    %566 = vmatpush1.xpose.msra.mxu0 %v266
    %567 = vmatprep.subr.mxu0 0.0
    %568 = vmatpush1.xpose.msra.mxu0 %v271
    %569 = vmatprep.subr.mxu0 0.0
    %570 = vmatpush1.xpose.msra.mxu0 %v274
    %571 = vmatprep.subr.mxu0 0.0
    %572 = vmatpush1.xpose.msra.mxu0 %v279
    %573 = vmatprep.subr.mxu0 0.0
    %574 = vmatpush1.xpose.msra.mxu0 %v282
    %575 = vmatprep.subr.mxu0 0.0
    %576 = vmatpush1.xpose.msra.mxu0 %v287
    %577 = vmatprep.subr.mxu0 0.0
    %578 = vmatpush1.xpose.msra.mxu0 %v290
    %579 = vmatprep.subr.mxu0 0.0
    %580 = vmatpush1.xpose.msra.mxu0 %v295
    %581 = vmatprep.subr.mxu0 0.0
    %582 = vmatpush1.xpose.msra.mxu0 %v298
    %583 = vmatprep.subr.mxu0 0.0
    %584 = vmatpush1.xpose.msra.mxu0 0.0
    %585 = vmatprep.subr.mxu0 0.0
    %586 = vmatpush1.xpose.msra.mxu0 0.0
    %587 = vmatprep.subr.mxu0 0.0
    %588 = vmatpush1.xpose.msra.mxu0 0.0
    %589 = vmatprep.subr.mxu0 0.0
    %590 = vmatpush1.xpose.msra.mxu0 0.0
    %591 = vmatprep.subr.mxu0 0.0
    %592 = vmatpush1.xpose.msra.mxu0 0.0
    %593 = vmatprep.subr.mxu0 0.0
    %594 = vmatpush1.xpose.msra.mxu0 0.0
    %595 = vmatprep.subr.mxu0 0.0
    %596 = vmatpush1.xpose.msra.mxu0 0.0
    %597 = vmatprep.subr.mxu0 0.0
    %598 = vmatpush1.xpose.msra.mxu0 0.0
    %599 = vmatprep.subr.mxu0 0.0
    %600 = vmatpush1.xpose.msra.mxu0 0.0
    %601 = vmatprep.subr.mxu0 0.0
    %602 = vmatpush1.xpose.msra.mxu0 0.0
    %603 = vmatprep.subr.mxu0 0.0
    %604 = vmatpush1.xpose.msra.mxu0 0.0
    %605 = vmatprep.subr.mxu0 0.0
    %606 = vmatpush1.xpose.msra.mxu0 0.0
    %607 = vmatprep.subr.mxu0 0.0
    %608 = vmatpush1.xpose.msra.mxu0 0.0
    %609 = vmatprep.subr.mxu0 0.0
    %610 = vmatpush1.xpose.msra.mxu0 0.0
    %611 = vmatprep.subr.mxu0 0.0
    %612 = vmatpush1.xpose.msra.mxu0 0.0
    %613 = vmatprep.subr.mxu0 0.0
    %614 = vmatpush1.xpose.msra.mxu0 0.0
    %615 = vmatprep.mubr.f32.mxu0 0.0
    %616 = vmatmul.mubr.f32.gmra.mrb[0].mxu0 %v550
    %v617 = vpop.f32.mrb[0].mxu0
    %v618 = vadd.f32 0.0, %v617
    %v619 = vpop.f32.mrb[0].mxu0
    %620 = vdwg.mxu0
    %v621 = vld [vmem:[%s5] sm:$0x1]
    %v622 = vadd.f32 %v618, %v621
    %623 = vst [vmem:[#allocation9] sm:$0x1] %v622
    // Predicated region
    $region38: #{tpu_custom_call.1} parent=1 // pred_check
      _
    $region39: #{tpu_custom_call.1} parent=1 // pred_check_branch
      %625 = sbr.rel (0) target = $region41
    $region40: #{tpu_custom_call.1} parent=1 // pred_region
      %s627 = ssub.s32 1024, 1024
      %628 = vsyncadd [#allocation4], %s627
      %s629 = sshll.u32 [#allocation8], 4
      %s630 = int_to_ptr.vmem [resolvable:$true] %s629
      %635 = dma.vmem_to_hbm [thread:$0]  %s630, 1024, %s6, [#allocation4], 64, 64, 4
    $region41: #{tpu_custom_call.1} parent=1 // pred_fallthru
      _
    // Predicated region
    $region42: #{tpu_custom_call.1} parent=1 // pred_check
      _
    $region43: #{tpu_custom_call.1} parent=1 // pred_check_branch
      %637 = sbr.rel (0) target = $region45
    $region44: #{tpu_custom_call.1} parent=1 // pred_region
      %s639 = ssub.s32 16, 16
      %640 = vsyncadd [#allocation10], %s639
      %s642 = sshll.u32 [#allocation9], 4
      %s643 = int_to_ptr.vmem [resolvable:$true] %s642
      %645 = dma.vmem_to_hbm [thread:$0]  %s643, 16, %s7, [#allocation10]
    $region45: #{tpu_custom_call.1} parent=1 // pred_fallthru
      _
    // Predicated region
    $region46: #{tpu_custom_call.1} parent=1 // pred_check
      _
    $region47: #{tpu_custom_call.1} parent=1 // pred_check_branch
      %647 = sbr.rel (0) target = $region49
    $region48: #{tpu_custom_call.1} parent=1 // pred_region
      %648 = dma.done [#allocation4], 1024
    $region49: #{tpu_custom_call.1} parent=1 // pred_fallthru
      _
    // Predicated region
    $region50: #{tpu_custom_call.1} parent=1 // pred_check
      _
    $region51: #{tpu_custom_call.1} parent=1 // pred_check_branch
      %650 = sbr.rel (0) target = $region53
    $region52: #{tpu_custom_call.1} parent=1 // pred_region
      %651 = dma.done [#allocation10], 16
    $region53: #{tpu_custom_call.1} parent=1 // pred_fallthru
      _
    %652 = vsyncpa [#allocation3], 1
    %653 = vsyncpa [#allocation6], 1
    %654 = vsyncpa [#allocation4], 1
    %655 = vsyncpa [#allocation10], 1

</llo_original>
